<compile_context>
chip_gen: v7x
topology: tpu7x:2x2x1
jax: 0.10.0
libtpu: 0.0.40
codegen_flags: <defaults>
</compile_context>

<pallas_src>
import functools

import jax
import jax.numpy as jnp
from jax.experimental import pallas as pl
from jax.experimental.pallas import tpu as pltpu

BN_EPS = 1e-5


# --------------------------------------------------------------------------- utils


def _round_up(x, m):
    return (x + m - 1) // m * m


def _device_kind():
    try:
        return jax.devices()[0].device_kind.lower()
    except Exception:
        return ""


def _vmem_capacity_bytes():
    try:
        cap = getattr(pltpu.get_tpu_info(), "vmem_capacity_bytes", None)
        if cap:
            return int(cap)
    except Exception:
        pass
    return 64 << 20  # conservative fallback: v7x per-TensorCore physical VMEM


def _pick_tile_f(out_dim, device_kind):
    # 256-wide tiles fill the 256-wide MXU on v6e/v7x and halve the feature steps,
    # but only when out_dim >= 512 so the parallel feature axis still has >= 2 tiles
    # (v7x has 2 TensorCores).  v5e's MXU is 128 wide: keep 128.
    if "v5" not in device_kind and out_dim >= 512:
        return 256
    return 128


def _block_need_bytes(tn, tk, tile_f, x_bytes, w_bytes):
    # Per-grid-step VMEM footprint: double-buffered x and W blocks, f32 output block
    # plus f32 temporaries, plus a possible in-kernel low-precision copy of x.
    return (2 * tn * tk * x_bytes
            + 2 * tk * tile_f * w_bytes
            + 4 * tn * tile_f * 4
            + tn * tk * 2)


def _pick_tk(rows, in_dim, tile_f, x_bytes, w_bytes, budget):
    if _block_need_bytes(rows, in_dim, tile_f, x_bytes, w_bytes) <= budget:
        return in_dim  # full K: x resident, no reduction axis at all
    if in_dim % 128 == 0:
        for tk in (2048, 1024, 512, 256, 128):
            if in_dim % tk == 0 and _block_need_bytes(
                    rows, tk, tile_f, x_bytes, w_bytes) <= budget:
                return tk
    return None


def _plan_blocks(n, in_dim, tile_f, x_bytes, w_bytes, budget, n_block, k_block):
    if n_block is not None or k_block is not None:  # explicit override (testing)
        tn = n if n_block is None else min(int(n_block), n)
        tk = in_dim if k_block is None else int(k_block)
    else:
        tn, tk = n, _pick_tk(n, in_dim, tile_f, x_bytes, w_bytes, budget)
        if tk is None:
            tn, tk = None, None
            for cand in (4096, 2048, 1024, 512, 256, 128, 64, 32, 16, 8):
                if cand >= n:
                    continue
                got = _pick_tk(cand, in_dim, tile_f, x_bytes, w_bytes, budget)
                if got is not None:
                    tn, tk = cand, got
                    break
            if tn is None:
                raise ValueError(
                    "LinearProjection: shapes too large for VMEM even with N/K tiling")
    assert in_dim % tk == 0 and (tk == in_dim or tk % 128 == 0), (in_dim, tk)
    assert tn == n or tn % 8 == 0, (n, tn)
    return tn, tk


# --------------------------------------------------------------------------- kernels


def _fused_fullk_kernel(x_ref, w_ref, gamma_ref, beta_ref, o_ref):
    """grid = (f_tiles,).  x fully resident; Linear + train-mode BN in one shot."""
    w = w_ref[...]                                          # (K, TILE_F)
    x = x_ref[...]                                          # (N, K)
    if x.dtype != w.dtype:
        x = x.astype(w.dtype)                               # cast in VMEM (x resident)
    y = jnp.dot(x, w, preferred_element_type=jnp.float32)   # (N, TILE_F) f32
    # ---- Dropout: identity (eval semantics) ----
    # ---- BatchNorm1d: two-pass (numerically safe) batch statistics ----
    inv_n = 1.0 / y.shape[0]
    mean = jnp.sum(y, axis=0, keepdims=True) * inv_n
    centered = y - mean
    var = jnp.sum(centered * centered, axis=0, keepdims=True) * inv_n
    scale = gamma_ref[...] * jax.lax.rsqrt(var + BN_EPS)
    o_ref[...] = centered * scale + beta_ref[...]


def _fused_ktiled_kernel(x_ref, w_ref, gamma_ref, beta_ref, o_ref):
    """grid = (f_tiles, k_tiles).  Accumulates directly into the resident f32 output
    block (assign at k==0 -> no zero-init pass, no scratch); BN at the last K step."""
    k = pl.program_id(1)
    w = w_ref[...]
    x = x_ref[...]
    if x.dtype != w.dtype:
        x = x.astype(w.dtype)
    part = jnp.dot(x, w, preferred_element_type=jnp.float32)

    @pl.when(k == 0)
    def _():
        o_ref[...] = part

    @pl.when(k > 0)
    def _():
        o_ref[...] += part

    @pl.when(k == pl.num_programs(1) - 1)
    def _():
        y = o_ref[...]
        inv_n = 1.0 / y.shape[0]
        mean = jnp.sum(y, axis=0, keepdims=True) * inv_n
        centered = y - mean
        var = jnp.sum(centered * centered, axis=0, keepdims=True) * inv_n
        scale = gamma_ref[...] * jax.lax.rsqrt(var + BN_EPS)
        o_ref[...] = centered * scale + beta_ref[...]


def _matmul_stats_kernel(x_ref, w_ref, y_ref, sum_ref, sumsq_ref):
    """grid = (f_tiles, n_tiles, k_tiles).  y accumulates over k in its resident f32
    output block; per-feature sum / sum-of-squares accumulate across n tiles."""
    n_i = pl.program_id(1)
    k_i = pl.program_id(2)
    w = w_ref[...]
    x = x_ref[...]
    if x.dtype != w.dtype:
        x = x.astype(w.dtype)
    part = jnp.dot(x, w, preferred_element_type=jnp.float32)

    @pl.when(k_i == 0)
    def _():
        y_ref[...] = part

    @pl.when(k_i > 0)
    def _():
        y_ref[...] += part

    @pl.when(k_i == pl.num_programs(2) - 1)
    def _():
        y = y_ref[...]
        s = jnp.sum(y, axis=0, keepdims=True)
        ss = jnp.sum(y * y, axis=0, keepdims=True)

        @pl.when(n_i == 0)
        def _():
            sum_ref[...] = s
            sumsq_ref[...] = ss

        @pl.when(n_i > 0)
        def _():
            sum_ref[...] += s
            sumsq_ref[...] += ss


def _bn_apply_kernel(y_ref, sum_ref, sumsq_ref, gamma_ref, beta_ref, o_ref, *, inv_n):
    """Apply folded BN scale/shift; writes in place over y (input_output_aliases)."""
    mean = sum_ref[...] * inv_n
    # TODO(synk): E[y^2]-E[y]^2 can cancel when |mean| >> std; a streaming two-pass /
    # Welford-style combine would be safer for the large-N path.
    var = jnp.maximum(sumsq_ref[...] * inv_n - mean * mean, 0.0)
    scale = gamma_ref[...] * jax.lax.rsqrt(var + BN_EPS)
    shift = beta_ref[...] - mean * scale
    o_ref[...] = y_ref[...] * scale + shift


# --------------------------------------------------------------------------- wrappers


def prepare_params(weight, gamma, beta, *, weight_dtype=None):
    """One-time weight-stationary prep.

    weight: (out_dim, in_dim) nn.Linear layout; gamma/beta: (out_dim,) BN affine.
    Returns (w_blocked, gamma2d, beta2d):
      w_blocked: (f_tiles, in_dim, TILE_F) tile-contiguous W^T blocks,
      gamma2d/beta2d: (1, f_pad) float32.
    The Linear bias is intentionally NOT used: training-mode BatchNorm subtracts the
    batch mean, which cancels any per-feature constant (only valid for train-mode BN).
    """
    out_dim, in_dim = weight.shape
    kind = _device_kind()
    tile_f = _pick_tile_f(out_dim, kind)
    if weight_dtype is None:
        # v5e is the most HBM-bandwidth-starved generation -> bf16 weights by default.
        weight_dtype = jnp.bfloat16 if "v5" in kind else jnp.float32
        # TODO(synk): int8 (v5e/v6e) / fp8 (v7x) weight paths for a further ~2x.
    f_pad = _round_up(out_dim, tile_f)
    pad = f_pad - out_dim
    w_t = jnp.transpose(weight)                               # (in_dim, out_dim)
    if pad:
        w_t = jnp.pad(w_t, ((0, 0), (0, pad)))
    # Tile-contiguous reblock: each (in_dim, tile_f) W tile is one contiguous HBM region.
    w_blocked = w_t.reshape(in_dim, f_pad // tile_f, tile_f).transpose(1, 0, 2)
    w_blocked = w_blocked.astype(weight_dtype)
    g = jnp.pad(gamma.astype(jnp.float32), (0, pad)).reshape(1, f_pad)
    b = jnp.pad(beta.astype(jnp.float32), (0, pad)).reshape(1, f_pad)
    return w_blocked, g, b


def _fused_call(x, w_blocked, gamma2d, beta2d, n, in_dim, f_tiles, tile_f, tk, kt,
                vmem_limit):
    f_pad = f_tiles * tile_f
    out_shape = jax.ShapeDtypeStruct((n, f_pad), jnp.float32)
    if kt == 1:
        # Full K: no reduction axis; constant x index map keeps x resident (one HBM read).
        return pl.pallas_call(
            _fused_fullk_kernel,
            out_shape=out_shape,
            grid=(f_tiles,),
            in_specs=[
                pl.BlockSpec((n, in_dim), lambda i: (0, 0)),
                pl.BlockSpec((pl.Squeezed(), in_dim, tile_f), lambda i: (i, 0, 0)),
                pl.BlockSpec((1, tile_f), lambda i: (0, i)),
                pl.BlockSpec((1, tile_f), lambda i: (0, i)),
            ],
            out_specs=pl.BlockSpec((n, tile_f), lambda i: (0, i)),
            compiler_params=pltpu.CompilerParams(
                dimension_semantics=("parallel",),
                vmem_limit_bytes=vmem_limit),
        )(x, w_blocked, gamma2d, beta2d)

    return pl.pallas_call(
        _fused_ktiled_kernel,
        out_shape=out_shape,
        grid=(f_tiles, kt),
        in_specs=[
            pl.BlockSpec((n, tk), lambda i, k: (0, k)),
            pl.BlockSpec((pl.Squeezed(), tk, tile_f), lambda i, k: (i, k, 0)),
            pl.BlockSpec((1, tile_f), lambda i, k: (0, i)),
            pl.BlockSpec((1, tile_f), lambda i, k: (0, i)),
        ],
        out_specs=pl.BlockSpec((n, tile_f), lambda i, k: (0, i)),
        compiler_params=pltpu.CompilerParams(
            dimension_semantics=("parallel", "arbitrary"),
            vmem_limit_bytes=vmem_limit),
    )(x, w_blocked, gamma2d, beta2d)


def _streaming_call(x, w_blocked, gamma2d, beta2d, n, in_dim, f_tiles, tile_f,
                    tn, tk, kt, vmem_limit):
    f_pad = f_tiles * tile_f
    nt = pl.cdiv(n, tn)
    n_pad = nt * tn
    if n_pad != n:
        # Zero rows contribute nothing to sum / sum-of-squares because the Linear bias
        # is dropped; statistics are divided by the TRUE batch size below.
        x = jnp.pad(x, ((0, n_pad - n), (0, 0)))

    y_full, fsum, fsumsq = pl.pallas_call(
        _matmul_stats_kernel,
        out_shape=(jax.ShapeDtypeStruct((n_pad, f_pad), jnp.float32),
                   jax.ShapeDtypeStruct((1, f_pad), jnp.float32),
                   jax.ShapeDtypeStruct((1, f_pad), jnp.float32)),
        grid=(f_tiles, nt, kt),
        in_specs=[
            pl.BlockSpec((tn, tk), lambda f, ni, ki: (ni, ki)),
            pl.BlockSpec((pl.Squeezed(), tk, tile_f), lambda f, ni, ki: (f, ki, 0)),
        ],
        out_specs=(
            pl.BlockSpec((tn, tile_f), lambda f, ni, ki: (ni, f)),
            pl.BlockSpec((1, tile_f), lambda f, ni, ki: (0, f)),
            pl.BlockSpec((1, tile_f), lambda f, ni, ki: (0, f)),
        ),
        compiler_params=pltpu.CompilerParams(
            dimension_semantics=("parallel", "arbitrary", "arbitrary"),
            vmem_limit_bytes=vmem_limit),
    )(x, w_blocked)

    out = pl.pallas_call(
        functools.partial(_bn_apply_kernel, inv_n=1.0 / n),
        out_shape=jax.ShapeDtypeStruct((n_pad, f_pad), jnp.float32),
        grid=(f_tiles, nt),
        in_specs=[
            pl.BlockSpec((tn, tile_f), lambda f, ni: (ni, f)),
            pl.BlockSpec((1, tile_f), lambda f, ni: (0, f)),
            pl.BlockSpec((1, tile_f), lambda f, ni: (0, f)),
            pl.BlockSpec((1, tile_f), lambda f, ni: (0, f)),
            pl.BlockSpec((1, tile_f), lambda f, ni: (0, f)),
        ],
        out_specs=pl.BlockSpec((tn, tile_f), lambda f, ni: (ni, f)),
        input_output_aliases={0: 0},   # normalize y in place (no extra HBM buffer)
        compiler_params=pltpu.CompilerParams(
            dimension_semantics=("parallel", "arbitrary"),
            vmem_limit_bytes=vmem_limit),
    )(y_full, fsum, fsumsq, gamma2d, beta2d)
    return out


def linear_projection_fwd(x, w_blocked, gamma2d, beta2d, out_dim, *,
                          n_block=None, k_block=None):
    """x: (N, in_dim) float.  Returns (N, out_dim) float32 (training-mode BN)."""
    n, in_dim_x = x.shape
    f_tiles, in_dim, tile_f = w_blocked.shape
    assert in_dim_x == in_dim, (in_dim_x, in_dim)
    f_pad = f_tiles * tile_f
    assert out_dim <= f_pad

    x_bytes = x.dtype.itemsize
    w_bytes = w_blocked.dtype.itemsize
    vmem_cap = _vmem_capacity_bytes()
    budget = int(0.45 * vmem_cap)

    tn, tk = _plan_blocks(n, in_dim, tile_f, x_bytes, w_bytes, budget, n_block, k_block)
    kt = in_dim // tk

    need = _block_need_bytes(tn, tk, tile_f, x_bytes, w_bytes)
    vmem_limit = int(min(int(0.9 * vmem_cap), max(2 * need, 32 << 20)))

    # A wrapper-side low-precision cast of x only pays when x is re-read from HBM
    # multiple times (K- or N-tiled); with a resident x, cast inside the kernel.
    if x.dtype != w_blocked.dtype and (tk < in_dim or tn < n):
        x = x.astype(w_blocked.dtype)

    if tn >= n:
        out_padded = _fused_call(x, w_blocked, gamma2d, beta2d,
                                 n, in_dim, f_tiles, tile_f, tk, kt, vmem_limit)
        if f_pad == out_dim:          # skip the extra slicing pass when not needed
            return out_padded
        return out_padded[:, :out_dim]

    out_padded = _streaming_call(x, w_blocked, gamma2d, beta2d,
                                 n, in_dim, f_tiles, tile_f, tn, tk, kt, vmem_limit)
    if f_pad == out_dim and out_padded.shape[0] == n:
        return out_padded
    return out_padded[:n, :out_dim]


# --------------------------------------------------------------------------- reference / test


def reference(x, weight, bias, gamma, beta):
    """Faithful f32 reference: Linear(+bias) -> (eval) Dropout -> train-mode BN."""
    y = x @ weight.T + bias
    mean = jnp.mean(y, axis=0, keepdims=True)
    var = jnp.mean((y - mean) ** 2, axis=0, keepdims=True)
    return gamma * (y - mean) / jnp.sqrt(var + BN_EPS) + beta


def _run_case(key, n, in_dim, out_dim, *, weight_dtype, random_affine, atol, rtol,
              n_block=None, k_block=None):
    kx, kw, kb, kg, kbe = jax.random.split(key, 5)
    x = jax.random.normal(kx, (n, in_dim), dtype=jnp.float32)

    limit = (6.0 / (in_dim + out_dim)) ** 0.5            # nn.init.xavier_uniform_
    weight = jax.random.uniform(kw, (out_dim, in_dim), jnp.float32, -limit, limit)
    bbound = 1.0 / (in_dim ** 0.5)                        # nn.Linear default bias init
    bias = jax.random.uniform(kb, (out_dim,), jnp.float32, -bbound, bbound)
    if random_affine:                                     # "as if trained"
        gamma = 1.0 + 0.1 * jax.random.normal(kg, (out_dim,), jnp.float32)
        beta = 0.1 * jax.random.normal(kbe, (out_dim,), jnp.float32)
    else:                                                 # BatchNorm1d default init
        gamma = jnp.ones((out_dim,), jnp.float32)
        beta = jnp.zeros((out_dim,), jnp.float32)

    w_p, g_p, b_p = prepare_params(weight, gamma, beta, weight_dtype=weight_dtype)
    fwd = jax.jit(linear_projection_fwd, static_argnums=(4,),
                  static_argnames=("n_block", "k_block"))
    out = jax.block_until_ready(
        fwd(x, w_p, g_p, b_p, out_dim, n_block=n_block, k_block=k_block))
    ref = jax.block_until_ready(reference(x, weight, bias, gamma, beta))

    assert out.shape == (n, out_dim), out.shape
    max_err = float(jnp.max(jnp.abs(out - ref)))
    assert jnp.allclose(out, ref, atol=atol, rtol=rtol), (
        f"mismatch n={n} in={in_dim} out={out_dim} dtype={weight_dtype} "
        f"n_block={n_block} k_block={k_block}: max abs err = {max_err}")


if __name__ == "__main__":
    key = jax.random.PRNGKey(0)
    k1, k2, k3, k4, k5 = jax.random.split(key, 5)

    # 1. Small typical shape: fused full-K path, single feature tile.
    _run_case(k1, 8, 32, 16, weight_dtype=jnp.float32, random_affine=False,
              atol=5e-4, rtol=5e-4)
    # 2. Multi-feature-tile, K-tiled fused path (forced), trained-looking BN affine.
    _run_case(k2, 32, 256, 384, weight_dtype=jnp.float32, random_affine=True,
              atol=5e-4, rtol=5e-4, k_block=128)
    # 3. Streaming large-batch path (forced N tiling, ragged N): cross-tile BN stats.
    _run_case(k3, 40, 256, 384, weight_dtype=jnp.float32, random_affine=True,
              atol=5e-4, rtol=5e-4, n_block=16, k_block=128)
    # 4. bf16 weights into the MXU (f32 accumulation), fused full-K path.
    _run_case(k4, 32, 256, 384, weight_dtype=jnp.bfloat16, random_affine=True,
              atol=1e-1, rtol=1e-1)
    # 5. out_dim >= 512 -> 256-wide feature tiles on v6e/v7x (128 on v5e), no padding.
    _run_case(k5, 16, 128, 512, weight_dtype=jnp.float32, random_affine=True,
              atol=5e-4, rtol=5e-4)

    print("KERNEL_OK")
</pallas_src>

<mosaic_0001>
module attributes {stable_mosaic.version = 11 : i64} {
  func.func @_fused_fullk_kernel(%arg0: i32, %arg1: memref<8x32xf32, #tpu.memory_space<vmem>>, %arg2: memref<1x32x128xf32, #tpu.memory_space<vmem>>, %arg3: memref<1x128xf32, #tpu.memory_space<vmem>>, %arg4: memref<1x128xf32, #tpu.memory_space<vmem>>, %arg5: memref<8x128xf32, #tpu.memory_space<vmem>>) attributes {dimension_semantics = [#tpu.dimension_semantics<parallel>], iteration_bounds = array<i64: 1>, scalar_prefetch = 0 : i64, scratch_operands = 0 : i64, tpu.core_type = #tpu.core_type<tc>, window_params = [{pipeline_mode = #tpu.pipeline_mode<synchronous>, transform_indices = @transform_0, window_bounds = array<i64: 8, 32>}, {transform_indices = @transform_1, window_bounds = array<i64: 1, 32, 128>}, {transform_indices = @transform_2, window_bounds = array<i64: 1, 128>}, {transform_indices = @transform_3, window_bounds = array<i64: 1, 128>}, {transform_indices = @transform_4, window_bounds = array<i64: 8, 128>}]} {
    %c0 = arith.constant 0 : index
    %c0_0 = arith.constant 0 : index
    %c0_1 = arith.constant 0 : index
    %0 = vector.load %arg2[%c0, %c0_0, %c0_1] : memref<1x32x128xf32, #tpu.memory_space<vmem>>, vector<1x32x128xf32>
    %1 = vector.shape_cast %0 : vector<1x32x128xf32> to vector<32x128xf32>
    %c0_2 = arith.constant 0 : index
    %c0_3 = arith.constant 0 : index
    %2 = vector.load %arg1[%c0_2, %c0_3] : memref<8x32xf32, #tpu.memory_space<vmem>>, vector<8x32xf32>
    %cst = arith.constant dense<0.000000e+00> : vector<8x128xf32>
    %3 = tpu.matmul %2, %1, %cst {dimension_numbers = #tpu.dot_dimension_numbers<[1], [0], [0], [1], [0, 0, 1, 1], [], []>} : vector<8x32xf32>, vector<32x128xf32>, vector<8x128xf32> -> vector<8x128xf32>
    %cst_4 = arith.constant dense<0.000000e+00> : vector<128xf32>
    %4 = vector.multi_reduction <add>, %3, %cst_4 [0] : vector<8x128xf32> to vector<128xf32>
    %5 = vector.shape_cast %4 : vector<128xf32> to vector<1x128xf32>
    %cst_5 = arith.constant 1.250000e-01 : f32
    %6 = vector.broadcast %cst_5 : f32 to vector<1x128xf32>
    %7 = arith.mulf %5, %6 : vector<1x128xf32>
    %8 = vector.broadcast %7 : vector<1x128xf32> to vector<8x128xf32>
    %9 = arith.subf %3, %8 : vector<8x128xf32>
    %10 = arith.mulf %9, %9 : vector<8x128xf32>
    %cst_6 = arith.constant dense<0.000000e+00> : vector<128xf32>
    %11 = vector.multi_reduction <add>, %10, %cst_6 [0] : vector<8x128xf32> to vector<128xf32>
    %12 = vector.shape_cast %11 : vector<128xf32> to vector<1x128xf32>
    %cst_7 = arith.constant 1.250000e-01 : f32
    %13 = vector.broadcast %cst_7 : f32 to vector<1x128xf32>
    %14 = arith.mulf %12, %13 : vector<1x128xf32>
    %c0_8 = arith.constant 0 : index
    %c0_9 = arith.constant 0 : index
    %15 = vector.load %arg3[%c0_8, %c0_9] : memref<1x128xf32, #tpu.memory_space<vmem>>, vector<1x128xf32>
    %cst_10 = arith.constant 9.99999974E-6 : f32
    %16 = vector.broadcast %cst_10 : f32 to vector<1x128xf32>
    %17 = arith.addf %14, %16 : vector<1x128xf32>
    %18 = math.rsqrt %17 : vector<1x128xf32>
    %19 = arith.mulf %15, %18 : vector<1x128xf32>
    %20 = vector.broadcast %19 : vector<1x128xf32> to vector<8x128xf32>
    %21 = arith.mulf %9, %20 : vector<8x128xf32>
    %c0_11 = arith.constant 0 : index
    %c0_12 = arith.constant 0 : index
    %22 = vector.load %arg4[%c0_11, %c0_12] : memref<1x128xf32, #tpu.memory_space<vmem>>, vector<1x128xf32>
    %23 = vector.broadcast %22 : vector<1x128xf32> to vector<8x128xf32>
    %24 = arith.addf %21, %23 : vector<8x128xf32>
    %c0_13 = arith.constant 0 : index
    %c0_14 = arith.constant 0 : index
    %25 = vector.load %arg5[%c0_13, %c0_14] : memref<8x128xf32, #tpu.memory_space<vmem>>, vector<8x128xf32>
    tpu.vector_store %arg5[%c0_13, %c0_14], %24 {strides = array<i32>} : memref<8x128xf32, #tpu.memory_space<vmem>>, vector<8x128xf32>,
    return
  }
  func.func @transform_0(%arg0: i32) -> (i32, i32) {
    %c0_i32 = arith.constant 0 : i32
    %c0_i32_0 = arith.constant 0 : i32
    %c0_i32_1 = arith.constant 0 : i32
    return %c0_i32, %c0_i32_0 : i32, i32
  }
  func.func @transform_1(%arg0: i32) -> (i32, i32, i32) {
    %c0_i32 = arith.constant 0 : i32
    %c0_i32_0 = arith.constant 0 : i32
    %c0_i32_1 = arith.constant 0 : i32
    return %arg0, %c0_i32, %c0_i32_0 : i32, i32, i32
  }
  func.func @transform_2(%arg0: i32) -> (i32, i32) {
    %c0_i32 = arith.constant 0 : i32
    %c0_i32_0 = arith.constant 0 : i32
    return %c0_i32, %arg0 : i32, i32
  }
  func.func @transform_3(%arg0: i32) -> (i32, i32) {
    %c0_i32 = arith.constant 0 : i32
    %c0_i32_0 = arith.constant 0 : i32
    return %c0_i32, %arg0 : i32, i32
  }
  func.func @transform_4(%arg0: i32) -> (i32, i32) {
    %c0_i32 = arith.constant 0 : i32
    %c0_i32_0 = arith.constant 0 : i32
    return %c0_i32, %arg0 : i32, i32
  }
}

</mosaic_0001>

<llo_original>
// kernel: linear_projection_fwd.1
$region0: #{linear_projection_fwd.1}
  #allocation0 [shape = 'u32[]', space=smem, size = 0x4, offset = 0x4, fixed_abs, tag = 'smem constant byte address 0x4 - core index']
  #allocation1 [shape = 'u32[144,128]{1,0:T(1,128)}', space=vmem, size = 0x12000, scoped, tag = 'internal scratch']
  %s0 = inlined_call_operand.hbm [shape: f32[8,32], index: 0, kind: input, shape index: {}]
  %s1 = inlined_call_operand.hbm [shape: f32[1,32,128], index: 1, kind: input, shape index: {}]
  %s2 = inlined_call_operand.vmem [shape: f32[1,128], index: 2, kind: input, shape index: {}]
  %s3 = inlined_call_operand.vmem [shape: f32[1,128], index: 3, kind: input, shape index: {}]
  %s4 = inlined_call_operand.hbm [shape: f32[8,128], index: 4, kind: output, shape index: {}]
  %s5 = sld [smem:[#allocation0]]
  $region34: #{linear_projection_fwd.1} parent=0
    _
  %s7 = ssub.s32 1, %s5
  %s8 = scalar_select 0, %s7, %s5
  $region1: #{linear_projection_fwd.1} parent=0
    #allocation2 [shape = 'u8[4096]{0}', space=vmem, size = 0x1000, scoped, tag = 'input window, operand 0, single buffered']
    #allocation3 [shape = 's32[1]{0}', space=sflag, size = 0x4, scoped, tag = 'scoped memory for linear_projection_fwd.1']
    #allocation4 [shape = 's32[1]{0}', space=sflag, size = 0x4, scoped, tag = 'scoped memory for linear_projection_fwd.1']
    #allocation5 [shape = 'u8[16384]{0}', space=vmem, size = 0x4000, scoped, tag = 'input window, operand 1, single buffered']
    #allocation6 [shape = 's32[1]{0}', space=sflag, size = 0x4, scoped, tag = 'scoped memory for linear_projection_fwd.1']
    #allocation7 [shape = 'u8[4096]{0}', space=vmem, size = 0x1000, scoped, tag = 'output window, operand 0, single buffered']
    %9 = vsyncpa [#allocation3], 0
    %10 = vsyncpa [#allocation6], 0
    %11 = vsyncpa [#allocation4], 0
    // Predicated region
    $region2: #{linear_projection_fwd.1} parent=1 // pred_check
      _
    $region3: #{linear_projection_fwd.1} parent=1 // pred_check_branch
      %13 = sbr.rel (0) target = $region5
    $region4: #{linear_projection_fwd.1} parent=1 // pred_region
      %s15 = ssub.s32 128, 128
      %16 = vsyncadd [#allocation3], %s15
      %s18 = sshll.u32 [#allocation2], 4
      %s19 = int_to_ptr.vmem [resolvable:$true] %s18
      %21 = dma.hbm_to_vmem [thread:$0]  %s0, 128, %s19, [#allocation3]
    $region5: #{linear_projection_fwd.1} parent=1 // pred_fallthru
      _
    // Predicated region
    $region6: #{linear_projection_fwd.1} parent=1 // pred_check
      _
    $region7: #{linear_projection_fwd.1} parent=1 // pred_check_branch
      %23 = sbr.rel (0) target = $region9
    $region8: #{linear_projection_fwd.1} parent=1 // pred_region
      %s25 = ssub.s32 512, 512
      %26 = vsyncadd [#allocation6], %s25
      %s27 = sshll.u32 [#allocation5], 4
      %s28 = int_to_ptr.vmem [resolvable:$true] %s27
      %33 = dma.hbm_to_vmem [thread:$0]  %s1, 512, %s28, [#allocation6], 128, 128, 8
    $region9: #{linear_projection_fwd.1} parent=1 // pred_fallthru
      _
    // Predicated region
    $region10: #{linear_projection_fwd.1} parent=1 // pred_check
      _
    $region11: #{linear_projection_fwd.1} parent=1 // pred_check_branch
      %35 = sbr.rel (0) target = $region13
    $region12: #{linear_projection_fwd.1} parent=1 // pred_region
      _
    $region13: #{linear_projection_fwd.1} parent=1 // pred_fallthru
      _
    // Predicated region
    $region14: #{linear_projection_fwd.1} parent=1 // pred_check
      _
    $region15: #{linear_projection_fwd.1} parent=1 // pred_check_branch
      %37 = sbr.rel (0) target = $region17
    $region16: #{linear_projection_fwd.1} parent=1 // pred_region
      _
    $region17: #{linear_projection_fwd.1} parent=1 // pred_fallthru
      _
    // Predicated region
    $region18: #{linear_projection_fwd.1} parent=1 // pred_check
      _
    $region19: #{linear_projection_fwd.1} parent=1 // pred_check_branch
      %39 = sbr.rel (0) target = $region21
    $region20: #{linear_projection_fwd.1} parent=1 // pred_region
      %40 = dma.done [#allocation3], 128
    $region21: #{linear_projection_fwd.1} parent=1 // pred_fallthru
      _
    // Predicated region
    $region22: #{linear_projection_fwd.1} parent=1 // pred_check
      _
    $region23: #{linear_projection_fwd.1} parent=1 // pred_check_branch
      %42 = sbr.rel (0) target = $region25
    $region24: #{linear_projection_fwd.1} parent=1 // pred_region
      %43 = dma.done [#allocation6], 512
    $region25: #{linear_projection_fwd.1} parent=1 // pred_fallthru
      _
    %v44 = vld [vmem:[#allocation5] sm:$0xff]
    %v45 = vld [vmem:[#allocation5 + $0x8] sm:$0xff]
    %v46 = vld [vmem:[#allocation5 + $0x10] sm:$0xff]
    %v47 = vld [vmem:[#allocation5 + $0x18] sm:$0xff]
    %v48 = vld [vmem:[#allocation2] sm:$0xff]
    %vm49 = vcmask 261120
    %v51 = vsel %vm49, %v48, 0
    %53 = vmatprep.subr.mxu0 0.0
    %54 = vmatpush1.msra.mxu0 %v44
    %55 = vmatprep.subr.mxu0 0.0
    %56 = vmatpush1.msra.mxu0 %v45
    %57 = vmatprep.subr.mxu0 0.0
    %58 = vmatpush1.msra.mxu0 %v46
    %59 = vmatprep.subr.mxu0 0.0
    %60 = vmatpush1.msra.mxu0 %v47
    %61 = vmatprep.subr.mxu0 0.0
    %62 = vmatpush1.msra.mxu0 0.0
    %63 = vmatprep.subr.mxu0 0.0
    %64 = vmatpush1.msra.mxu0 0.0
    %65 = vmatprep.subr.mxu0 0.0
    %66 = vmatpush1.msra.mxu0 0.0
    %67 = vmatprep.subr.mxu0 0.0
    %68 = vmatpush1.msra.mxu0 0.0
    %69 = vmatprep.subr.mxu0 0.0
    %70 = vmatpush1.msra.mxu0 0.0
    %71 = vmatprep.subr.mxu0 0.0
    %72 = vmatpush1.msra.mxu0 0.0
    %73 = vmatprep.subr.mxu0 0.0
    %74 = vmatpush1.msra.mxu0 0.0
    %75 = vmatprep.subr.mxu0 0.0
    %76 = vmatpush1.msra.mxu0 0.0
    %77 = vmatprep.subr.mxu0 0.0
    %78 = vmatpush1.msra.mxu0 0.0
    %79 = vmatprep.subr.mxu0 0.0
    %80 = vmatpush1.msra.mxu0 0.0
    %81 = vmatprep.subr.mxu0 0.0
    %82 = vmatpush1.msra.mxu0 0.0
    %83 = vmatprep.subr.mxu0 0.0
    %84 = vmatpush1.msra.mxu0 0.0
    %85 = vmatprep.subr.mxu0 0.0
    %86 = vmatpush1.msra.mxu0 0.0
    %87 = vmatprep.subr.mxu0 0.0
    %88 = vmatpush1.msra.mxu0 0.0
    %89 = vmatprep.subr.mxu0 0.0
    %90 = vmatpush1.msra.mxu0 0.0
    %91 = vmatprep.subr.mxu0 0.0
    %92 = vmatpush1.msra.mxu0 0.0
    %93 = vmatprep.subr.mxu0 0.0
    %94 = vmatpush1.msra.mxu0 0.0
    %95 = vmatprep.subr.mxu0 0.0
    %96 = vmatpush1.msra.mxu0 0.0
    %97 = vmatprep.subr.mxu0 0.0
    %98 = vmatpush1.msra.mxu0 0.0
    %99 = vmatprep.subr.mxu0 0.0
    %100 = vmatpush1.msra.mxu0 0.0
    %101 = vmatprep.subr.mxu0 0.0
    %102 = vmatpush1.msra.mxu0 0.0
    %103 = vmatprep.subr.mxu0 0.0
    %104 = vmatpush1.msra.mxu0 0.0
    %105 = vmatprep.subr.mxu0 0.0
    %106 = vmatpush1.msra.mxu0 0.0
    %107 = vmatprep.subr.mxu0 0.0
    %108 = vmatpush1.msra.mxu0 0.0
    %109 = vmatprep.subr.mxu0 0.0
    %110 = vmatpush1.msra.mxu0 0.0
    %111 = vmatprep.subr.mxu0 0.0
    %112 = vmatpush1.msra.mxu0 0.0
    %113 = vmatprep.subr.mxu0 0.0
    %114 = vmatpush1.msra.mxu0 0.0
    %115 = vmatprep.subr.mxu0 0.0
    %116 = vmatpush1.msra.mxu0 0.0
    %117 = vmatprep.mubr.f32.mxu0 0.0
    %118 = vmatmul.mubr.f32.gmra.mrb[0].mxu0 %v51
    %v119 = vpop.f32.mrb[0].mxu0
    %v120 = vadd.f32 0.0, %v119
    %v121 = vpop.f32.mrb[0].mxu0
    %122 = vdwg.mxu0
    %v123 = vrot.slane %v120, 4
    %v124 = vadd.f32 %v120, %v123
    %v125 = vrot.slane %v124, 2
    %v126 = vadd.f32 %v124, %v125
    %v127 = vrot.slane %v126, 1
    %v128 = vadd.f32 %v126, %v127
    %v129 = vmul.f32 %v128, 0.125
    %v130 = vsub.f32 %v120, %v129
    %v131 = vmul.f32 %v130, %v130
    %v132 = vrot.slane %v131, 4
    %v133 = vadd.f32 %v131, %v132
    %v134 = vrot.slane %v133, 2
    %v135 = vadd.f32 %v133, %v134
    %v136 = vrot.slane %v135, 1
    %v137 = vadd.f32 %v135, %v136
    %v138 = vmul.f32 %v137, 0.125
    %v139 = vld [vmem:[%s2] sm:$0x1]
    %v140 = vadd.f32 %v138, 1e-05
    %v141 = vrsqrt.pop %v140
    %v142 = vmul.f32 %v139, %v141
    %v144 = vlaneseq
    %v145 = vshrl.u32 %v144, 7
    %v146 = vsub.s32 0, %v145
    %v147 = vrot.slane %v142, %v146
    %v149 = vmul.f32 %v130, %v147
    %v150 = vld [vmem:[%s3] sm:$0x1]
    %v152 = vlaneseq
    %v153 = vshrl.u32 %v152, 7
    %v154 = vsub.s32 0, %v153
    %v155 = vrot.slane %v150, %v154
    %v157 = vadd.f32 %v149, %v155
    %158 = vst [vmem:[#allocation7] sm:$0xff] %v157
    // Predicated region
    $region26: #{linear_projection_fwd.1} parent=1 // pred_check
      _
    $region27: #{linear_projection_fwd.1} parent=1 // pred_check_branch
      %160 = sbr.rel (0) target = $region29
    $region28: #{linear_projection_fwd.1} parent=1 // pred_region
      %s162 = ssub.s32 128, 128
      %163 = vsyncadd [#allocation4], %s162
      %s165 = sshll.u32 [#allocation7], 4
      %s166 = int_to_ptr.vmem [resolvable:$true] %s165
      %168 = dma.vmem_to_hbm [thread:$0]  %s166, 128, %s4, [#allocation4]
    $region29: #{linear_projection_fwd.1} parent=1 // pred_fallthru
      _
    // Predicated region
    $region30: #{linear_projection_fwd.1} parent=1 // pred_check
      _
    $region31: #{linear_projection_fwd.1} parent=1 // pred_check_branch
      %170 = sbr.rel (0) target = $region33
    $region32: #{linear_projection_fwd.1} parent=1 // pred_region
      %171 = dma.done [#allocation4], 128
    $region33: #{linear_projection_fwd.1} parent=1 // pred_fallthru
      _
    %172 = vsyncpa [#allocation3], 1
    %173 = vsyncpa [#allocation6], 1
    %174 = vsyncpa [#allocation4], 1

</llo_original>
